<compile_context>
chip_gen: v7x
topology: tpu7x:2x2x1
jax: 0.10.0
libtpu: 0.0.40
codegen_flags: <defaults>
</compile_context>

<pallas_src>
import functools

import jax
import jax.numpy as jnp
from jax.experimental import pallas as pl
from jax.experimental.pallas import tpu as pltpu

EPS = 1e-5          # nn.BatchNorm1d default
NEG_SLOPE = 0.01    # nn.LeakyReLU default


def _leaky_relu(x):
    return jnp.where(x >= 0, x, NEG_SLOPE * x)


def _round_up(x, m):
    return (x + m - 1) // m * m


# --------------------------------------------------------------------------
# Shared kernel helpers
# --------------------------------------------------------------------------
def _accumulate_stats(acc_ref, h, i, true_b, tile_b, need_mask):
    """Accumulate per-feature (sum, sum_sq) of h over valid (non-padded) rows."""
    if need_mask:
        row = i * tile_b + jax.lax.broadcasted_iota(jnp.int32, (tile_b, 1), 0)
        h_valid = jnp.where(row < true_b, h, 0.0)
    else:
        h_valid = h
    acc_ref[0:1, :] += jnp.sum(h_valid, axis=0, keepdims=True)
    acc_ref[1:2, :] += jnp.sum(h_valid * h, axis=0, keepdims=True)  # zero rows stay zero


def _write_scale_shift(ss_ref, acc_ref, g_ref, beta_ref, true_b):
    """Turn (sum, sum_sq) into the fused BN (scale, shift) row pair, exactly once."""
    inv_b = 1.0 / true_b
    mean = acc_ref[0:1, :] * inv_b
    var = acc_ref[1:2, :] * inv_b - mean * mean          # biased variance (BN training)
    scale = g_ref[...] * jax.lax.rsqrt(var + EPS)        # rsqrt -> EUP (free slot)
    ss_ref[0:1, :] = scale
    ss_ref[1:2, :] = beta_ref[...] - mean * scale


# --------------------------------------------------------------------------
# Pass 1: per batch tile  h1 = x @ W1  (bias dropped — cancelled by BN1).
#         Accumulate BN1 stats only; h1 is NOT written to HBM.
# --------------------------------------------------------------------------
def _pass1_kernel(x_ref, w1_ref, g_ref, beta_ref, ss_ref, acc_ref, *,
                  true_b, tile_b, need_mask, mxu_dtype):
    i = pl.program_id(0)

    @pl.when(i == 0)
    def _init():
        acc_ref[...] = jnp.zeros_like(acc_ref)

    h1 = jnp.dot(x_ref[...].astype(mxu_dtype), w1_ref[...],
                 preferred_element_type=jnp.float32)
    _accumulate_stats(acc_ref, h1, i, true_b, tile_b, need_mask)

    @pl.when(i == pl.num_programs(0) - 1)
    def _finalize():
        _write_scale_shift(ss_ref, acc_ref, g_ref, beta_ref, true_b)


# --------------------------------------------------------------------------
# Pass 2: recompute h1 (bit-identical), a1 = LeakyReLU(h1*scale1 + shift1),
#         h2 = a1 @ W2, write h2 tiles, accumulate BN2 stats, emit (scale2, shift2).
# --------------------------------------------------------------------------
def _pass2_kernel(x_ref, w1_ref, ss1_ref, w2_ref, g_ref, beta_ref,
                  h2_ref, ss2_ref, acc_ref, *,
                  true_b, tile_b, need_mask, mxu_dtype):
    i = pl.program_id(0)

    @pl.when(i == 0)
    def _init():
        acc_ref[...] = jnp.zeros_like(acc_ref)

    h1 = jnp.dot(x_ref[...].astype(mxu_dtype), w1_ref[...],
                 preferred_element_type=jnp.float32)
    # Fused BN1 as one scale/shift FMA + LeakyReLU (f32 VALU work).
    a1 = _leaky_relu(h1 * ss1_ref[0:1, :] + ss1_ref[1:2, :])
    h2 = jnp.dot(a1.astype(mxu_dtype), w2_ref[...],
                 preferred_element_type=jnp.float32)
    h2_ref[...] = h2
    _accumulate_stats(acc_ref, h2, i, true_b, tile_b, need_mask)

    @pl.when(i == pl.num_programs(0) - 1)
    def _finalize():
        _write_scale_shift(ss2_ref, acc_ref, g_ref, beta_ref, true_b)


# --------------------------------------------------------------------------
# Pass 3: out = LeakyReLU(h2 * scale2 + shift2) — no cross-tile state,
#         grid axis 'parallel' (megacore-friendly on v7x).
# --------------------------------------------------------------------------
def _pass3_kernel(h2_ref, ss2_ref, o_ref):
    o_ref[...] = _leaky_relu(h2_ref[...] * ss2_ref[0:1, :] + ss2_ref[1:2, :])


# --------------------------------------------------------------------------
# Wrapper
# --------------------------------------------------------------------------
def mlp_forward(x, params, *, mxu_dtype=jnp.float32, tile_rows=512):
    """Forward pass: x (B, dim_in) f32 -> (B, 128) f32.

    params holds pre-transposed Linear weights (in, out). Linear biases b1/b2 are
    accepted but intentionally unused: training-mode BatchNorm cancels them exactly.
    Set mxu_dtype=jnp.bfloat16 on v6e/v7x for faster matmuls (BN math stays f32).
    """
    B, dim_in = x.shape
    w1, w2 = params["w1"], params["w2"]
    H1, H2 = w1.shape[1], w2.shape[1]
    g1, be1 = params["g1"], params["beta1"]
    g2, be2 = params["g2"], params["beta2"]

    # Batch tiling: pad to a multiple of the tile; padded rows are masked out of the
    # BN statistics and sliced off at the end.
    tile_b = min(tile_rows, _round_up(B, 8))
    padded_b = _round_up(B, tile_b)
    n_tiles = padded_b // tile_b
    pad = padded_b - B
    xp = jnp.pad(x, ((0, pad), (0, 0))) if pad else x

    w1c = w1.astype(mxu_dtype)
    w2c = w2.astype(mxu_dtype)

    row_spec = lambda feat: pl.BlockSpec((tile_b, feat), lambda i: (i, 0))
    const2 = lambda shape: pl.BlockSpec(shape, lambda i: (0, 0))

    seq_params = pltpu.CompilerParams(dimension_semantics=("arbitrary",))
    par_params = pltpu.CompilerParams(dimension_semantics=("parallel",))

    kw = dict(true_b=B, tile_b=tile_b, need_mask=pad > 0, mxu_dtype=mxu_dtype)

    # Pass 1: BN1 fused (scale, shift) only — h1 never touches HBM.
    ss1 = pl.pallas_call(
        functools.partial(_pass1_kernel, **kw),
        out_shape=jax.ShapeDtypeStruct((2, H1), jnp.float32),
        grid=(n_tiles,),
        in_specs=[row_spec(dim_in), const2(w1c.shape),
                  const2(g1.shape), const2(be1.shape)],
        out_specs=const2((2, H1)),
        scratch_shapes=[pltpu.VMEM((2, H1), jnp.float32)],
        compiler_params=seq_params,
    )(xp, w1c, g1, be1)

    # Pass 2: recompute h1, BN1-FMA + LeakyReLU + matmul2 -> h2 tiles + BN2 (scale, shift).
    h2, ss2 = pl.pallas_call(
        functools.partial(_pass2_kernel, **kw),
        out_shape=(jax.ShapeDtypeStruct((padded_b, H2), jnp.float32),
                   jax.ShapeDtypeStruct((2, H2), jnp.float32)),
        grid=(n_tiles,),
        in_specs=[row_spec(dim_in), const2(w1c.shape), const2((2, H1)),
                  const2(w2c.shape), const2(g2.shape), const2(be2.shape)],
        out_specs=(row_spec(H2), const2((2, H2))),
        scratch_shapes=[pltpu.VMEM((2, H2), jnp.float32)],
        compiler_params=seq_params,
    )(xp, w1c, ss1, w2c, g2, be2)

    # Pass 3: BN2-FMA + LeakyReLU (parallel over batch tiles).
    out = pl.pallas_call(
        _pass3_kernel,
        out_shape=jax.ShapeDtypeStruct((padded_b, H2), jnp.float32),
        grid=(n_tiles,),
        in_specs=[row_spec(H2), const2((2, H2))],
        out_specs=row_spec(H2),
        compiler_params=par_params,
    )(h2, ss2)

    return out[:B] if pad else out


# --------------------------------------------------------------------------
# Parameters + pure-JAX reference (PyTorch semantics, Linear biases INCLUDED)
# --------------------------------------------------------------------------
def init_params(dim_in, key, h1=512, h2=128):
    """PyTorch-style init. Linear weights stored transposed as (in, out)."""
    k1, k2, k3, k4, k5, k6, k7, k8 = jax.random.split(key, 8)
    bound1 = 1.0 / (dim_in ** 0.5)
    bound2 = 1.0 / (h1 ** 0.5)
    w1 = jax.random.uniform(k1, (dim_in, h1), jnp.float32, -bound1, bound1)
    b1 = jax.random.uniform(k2, (1, h1), jnp.float32, -bound1, bound1)
    w2 = jax.random.uniform(k3, (h1, h2), jnp.float32, -bound2, bound2)
    b2 = jax.random.uniform(k4, (1, h2), jnp.float32, -bound2, bound2)
    # PyTorch BatchNorm1d default init is weight=1 / bias=0; use non-trivial values
    # so the affine path is genuinely exercised by the checks.
    g1 = jax.random.uniform(k5, (1, h1), jnp.float32, 0.5, 1.5)
    beta1 = jax.random.uniform(k6, (1, h1), jnp.float32, -0.5, 0.5)
    g2 = jax.random.uniform(k7, (1, h2), jnp.float32, 0.5, 1.5)
    beta2 = jax.random.uniform(k8, (1, h2), jnp.float32, -0.5, 0.5)
    return dict(w1=w1, b1=b1, g1=g1, beta1=beta1,
                w2=w2, b2=b2, g2=g2, beta2=beta2)


def reference_forward(x, p):
    """Pure-JAX reference matching the PyTorch module (with Linear biases)."""
    h1 = x @ p["w1"] + p["b1"]
    m1 = h1.mean(0, keepdims=True)
    v1 = ((h1 - m1) ** 2).mean(0, keepdims=True)
    a1 = _leaky_relu((h1 - m1) / jnp.sqrt(v1 + EPS) * p["g1"] + p["beta1"])
    h2 = a1 @ p["w2"] + p["b2"]
    m2 = h2.mean(0, keepdims=True)
    v2 = ((h2 - m2) ** 2).mean(0, keepdims=True)
    return _leaky_relu((h2 - m2) / jnp.sqrt(v2 + EPS) * p["g2"] + p["beta2"])


if __name__ == "__main__":
    key = jax.random.PRNGKey(0)
    kx1, kx2, kp = jax.random.split(key, 3)

    DIM_IN = 32
    params = init_params(DIM_IN, kp)

    # Case 1: tiny batch (single tile, no padding), exact f32 path.
    x1 = jax.random.normal(kx1, (8, DIM_IN), jnp.float32)
    out1 = jax.block_until_ready(mlp_forward(x1, params))
    ref1 = reference_forward(x1, params)
    assert out1.shape == (8, 128)
    assert jnp.allclose(out1, ref1, atol=1e-4, rtol=1e-4), "f32 single-tile mismatch"

    # Case 2: multi-tile batch exercising padding/masking of BN statistics.
    x2 = jax.random.normal(kx2, (300, DIM_IN), jnp.float32)
    out2 = jax.block_until_ready(mlp_forward(x2, params, tile_rows=128))
    ref2 = reference_forward(x2, params)
    assert out2.shape == (300, 128)
    assert jnp.allclose(out2, ref2, atol=1e-3, rtol=1e-3), "f32 multi-tile mismatch"

    # Case 3: bf16 MXU inputs (v6e/v7x fast path), default tile; BN math stays f32.
    out3 = jax.block_until_ready(mlp_forward(x2, params, mxu_dtype=jnp.bfloat16))
    assert out3.shape == (300, 128)
    assert bool(jnp.max(jnp.abs(out3 - ref2)) < 0.25), "bf16 path diverged"

    print("KERNEL_OK")
</pallas_src>

<mosaic_0001>
module attributes {stable_mosaic.version = 11 : i64} {
  func.func @_pass1_kernel(%arg0: i32, %arg1: memref<8x32xf32, #tpu.memory_space<vmem>>, %arg2: memref<32x512xf32, #tpu.memory_space<vmem>>, %arg3: memref<1x512xf32, #tpu.memory_space<vmem>>, %arg4: memref<1x512xf32, #tpu.memory_space<vmem>>, %arg5: memref<2x512xf32, #tpu.memory_space<vmem>>, %arg6: memref<2x512xf32, #tpu.memory_space<vmem>>) attributes {dimension_semantics = [#tpu.dimension_semantics<arbitrary>], iteration_bounds = array<i64: 1>, scalar_prefetch = 0 : i64, scratch_operands = 1 : i64, tpu.core_type = #tpu.core_type<tc>, window_params = [{transform_indices = @transform_0, window_bounds = array<i64: 8, 32>}, {pipeline_mode = #tpu.pipeline_mode<synchronous>, transform_indices = @transform_1, window_bounds = array<i64: 32, 512>}, {pipeline_mode = #tpu.pipeline_mode<synchronous>, transform_indices = @transform_2, window_bounds = array<i64: 1, 512>}, {pipeline_mode = #tpu.pipeline_mode<synchronous>, transform_indices = @transform_3, window_bounds = array<i64: 1, 512>}, {pipeline_mode = #tpu.pipeline_mode<synchronous>, transform_indices = @transform_4, window_bounds = array<i64: 2, 512>}]} {
    %c0_i32 = arith.constant 0 : i32
    %0 = arith.cmpi eq, %arg0, %c0_i32 : i32
    %1 = arith.extui %0 : i1 to i32
    %c0_i32_0 = arith.constant 0 : i32
    %2 = arith.cmpi ne, %1, %c0_i32_0 : i32
    scf.if %2 {
      %cst_15 = arith.constant 0.000000e+00 : f32
      %20 = vector.broadcast %cst_15 : f32 to vector<2x512xf32>
      %c0_16 = arith.constant 0 : index
      %c0_17 = arith.constant 0 : index
      %21 = vector.load %arg6[%c0_16, %c0_17] : memref<2x512xf32, #tpu.memory_space<vmem>>, vector<2x512xf32>
      tpu.vector_store %arg6[%c0_16, %c0_17], %20 {strides = array<i32>} : memref<2x512xf32, #tpu.memory_space<vmem>>, vector<2x512xf32>,
    } else {
    }
    %c0 = arith.constant 0 : index
    %c0_1 = arith.constant 0 : index
    %3 = vector.load %arg1[%c0, %c0_1] : memref<8x32xf32, #tpu.memory_space<vmem>>, vector<8x32xf32>
    %c0_2 = arith.constant 0 : index
    %c0_3 = arith.constant 0 : index
    %4 = vector.load %arg2[%c0_2, %c0_3] : memref<32x512xf32, #tpu.memory_space<vmem>>, vector<32x512xf32>
    %cst = arith.constant dense<0.000000e+00> : vector<8x512xf32>
    %5 = tpu.matmul %3, %4, %cst {dimension_numbers = #tpu.dot_dimension_numbers<[1], [0], [0], [1], [0, 0, 1, 1], [], []>} : vector<8x32xf32>, vector<32x512xf32>, vector<8x512xf32> -> vector<8x512xf32>
    %c0_4 = arith.constant 0 : index
    %c0_5 = arith.constant 0 : index
    %6 = vector.load %arg6[%c0_4, %c0_5] : memref<2x512xf32, #tpu.memory_space<vmem>>, vector<1x512xf32>
    %cst_6 = arith.constant dense<0.000000e+00> : vector<512xf32>
    %7 = vector.multi_reduction <add>, %5, %cst_6 [0] : vector<8x512xf32> to vector<512xf32>
    %8 = vector.shape_cast %7 : vector<512xf32> to vector<1x512xf32>
    %9 = arith.addf %6, %8 : vector<1x512xf32>
    %c0_7 = arith.constant 0 : index
    %c0_8 = arith.constant 0 : index
    %10 = vector.load %arg6[%c0_7, %c0_8] : memref<2x512xf32, #tpu.memory_space<vmem>>, vector<1x512xf32>
    tpu.vector_store %arg6[%c0_7, %c0_8], %9 {strides = array<i32>} : memref<2x512xf32, #tpu.memory_space<vmem>>, vector<1x512xf32>,
    %c1 = arith.constant 1 : index
    %c0_9 = arith.constant 0 : index
    %11 = vector.load %arg6[%c1, %c0_9] : memref<2x512xf32, #tpu.memory_space<vmem>>, vector<1x512xf32>
    %12 = arith.mulf %5, %5 : vector<8x512xf32>
    %cst_10 = arith.constant dense<0.000000e+00> : vector<512xf32>
    %13 = vector.multi_reduction <add>, %12, %cst_10 [0] : vector<8x512xf32> to vector<512xf32>
    %14 = vector.shape_cast %13 : vector<512xf32> to vector<1x512xf32>
    %15 = arith.addf %11, %14 : vector<1x512xf32>
    %c1_11 = arith.constant 1 : index
    %c0_12 = arith.constant 0 : index
    %16 = vector.load %arg6[%c1_11, %c0_12] : memref<2x512xf32, #tpu.memory_space<vmem>>, vector<1x512xf32>
    tpu.vector_store %arg6[%c1_11, %c0_12], %15 {strides = array<i32>} : memref<2x512xf32, #tpu.memory_space<vmem>>, vector<1x512xf32>,
    %c0_i32_13 = arith.constant 0 : i32
    %17 = arith.cmpi eq, %arg0, %c0_i32_13 : i32
    %18 = arith.extui %17 : i1 to i32
    %c0_i32_14 = arith.constant 0 : i32
    %19 = arith.cmpi ne, %18, %c0_i32_14 : i32
    scf.if %19 {
      %c0_15 = arith.constant 0 : index
      %c0_16 = arith.constant 0 : index
      %20 = vector.load %arg6[%c0_15, %c0_16] : memref<2x512xf32, #tpu.memory_space<vmem>>, vector<1x512xf32>
      %cst_17 = arith.constant 1.250000e-01 : f32
      %21 = vector.broadcast %cst_17 : f32 to vector<1x512xf32>
      %22 = arith.mulf %20, %21 : vector<1x512xf32>
      %c1_18 = arith.constant 1 : index
      %c0_19 = arith.constant 0 : index
      %23 = vector.load %arg6[%c1_18, %c0_19] : memref<2x512xf32, #tpu.memory_space<vmem>>, vector<1x512xf32>
      %cst_20 = arith.constant 1.250000e-01 : f32
      %24 = vector.broadcast %cst_20 : f32 to vector<1x512xf32>
      %25 = arith.mulf %23, %24 : vector<1x512xf32>
      %26 = arith.mulf %22, %22 : vector<1x512xf32>
      %27 = arith.subf %25, %26 : vector<1x512xf32>
      %c0_21 = arith.constant 0 : index
      %c0_22 = arith.constant 0 : index
      %28 = vector.load %arg3[%c0_21, %c0_22] : memref<1x512xf32, #tpu.memory_space<vmem>>, vector<1x512xf32>
      %cst_23 = arith.constant 9.99999974E-6 : f32
      %29 = vector.broadcast %cst_23 : f32 to vector<1x512xf32>
      %30 = arith.addf %27, %29 : vector<1x512xf32>
      %31 = math.rsqrt %30 : vector<1x512xf32>
      %32 = arith.mulf %28, %31 : vector<1x512xf32>
      %c0_24 = arith.constant 0 : index
      %c0_25 = arith.constant 0 : index
      %33 = vector.load %arg5[%c0_24, %c0_25] : memref<2x512xf32, #tpu.memory_space<vmem>>, vector<1x512xf32>
      tpu.vector_store %arg5[%c0_24, %c0_25], %32 {strides = array<i32>} : memref<2x512xf32, #tpu.memory_space<vmem>>, vector<1x512xf32>,
      %c0_26 = arith.constant 0 : index
      %c0_27 = arith.constant 0 : index
      %34 = vector.load %arg4[%c0_26, %c0_27] : memref<1x512xf32, #tpu.memory_space<vmem>>, vector<1x512xf32>
      %35 = arith.mulf %22, %32 : vector<1x512xf32>
      %36 = arith.subf %34, %35 : vector<1x512xf32>
      %c1_28 = arith.constant 1 : index
      %c0_29 = arith.constant 0 : index
      %37 = vector.load %arg5[%c1_28, %c0_29] : memref<2x512xf32, #tpu.memory_space<vmem>>, vector<1x512xf32>
      tpu.vector_store %arg5[%c1_28, %c0_29], %36 {strides = array<i32>} : memref<2x512xf32, #tpu.memory_space<vmem>>, vector<1x512xf32>,
    } else {
    }
    return
  }
  func.func @transform_0(%arg0: i32) -> (i32, i32) {
    %c0_i32 = arith.constant 0 : i32
    %c0_i32_0 = arith.constant 0 : i32
    return %arg0, %c0_i32 : i32, i32
  }
  func.func @transform_1(%arg0: i32) -> (i32, i32) {
    %c0_i32 = arith.constant 0 : i32
    %c0_i32_0 = arith.constant 0 : i32
    %c0_i32_1 = arith.constant 0 : i32
    return %c0_i32, %c0_i32_0 : i32, i32
  }
  func.func @transform_2(%arg0: i32) -> (i32, i32) {
    %c0_i32 = arith.constant 0 : i32
    %c0_i32_0 = arith.constant 0 : i32
    %c0_i32_1 = arith.constant 0 : i32
    return %c0_i32, %c0_i32_0 : i32, i32
  }
  func.func @transform_3(%arg0: i32) -> (i32, i32) {
    %c0_i32 = arith.constant 0 : i32
    %c0_i32_0 = arith.constant 0 : i32
    %c0_i32_1 = arith.constant 0 : i32
    return %c0_i32, %c0_i32_0 : i32, i32
  }
  func.func @transform_4(%arg0: i32) -> (i32, i32) {
    %c0_i32 = arith.constant 0 : i32
    %c0_i32_0 = arith.constant 0 : i32
    %c0_i32_1 = arith.constant 0 : i32
    return %c0_i32, %c0_i32_0 : i32, i32
  }
}

</mosaic_0001>

<llo_original>
// kernel: tpu_custom_call.1
$region0: #{tpu_custom_call.1}
  #allocation0 [shape = 'u32[]', space=smem, size = 0x4, offset = 0x4, fixed_abs, tag = 'smem constant byte address 0x4 - core index']
  #allocation1 [shape = 'u32[144,128]{1,0:T(1,128)}', space=vmem, size = 0x12000, scoped, tag = 'internal scratch']
  #allocation2 [shape = 'f32[2,512]{1,0:T(2,128)}', space=vmem, size = 0x1000, scoped, tag = 'scratch operand']
  %s0 = inlined_call_operand.hbm [shape: f32[8,32], index: 0, kind: input, shape index: {}]
  %s1 = inlined_call_operand.hbm [shape: f32[32,512], index: 1, kind: input, shape index: {}]
  %s2 = inlined_call_operand.vmem [shape: f32[1,512], index: 2, kind: input, shape index: {}]
  %s3 = inlined_call_operand.vmem [shape: f32[1,512], index: 3, kind: input, shape index: {}]
  %s4 = inlined_call_operand.hbm [shape: f32[2,512], index: 4, kind: output, shape index: {}]
  %s5 = sld [smem:[#allocation0]]
  $region42: #{tpu_custom_call.1} parent=0
    _
  %s7 = ssub.s32 1, %s5
  %s8 = scalar_select 0, %s7, %s5
  $region1: #{tpu_custom_call.1} parent=0
    #allocation3 [shape = 'u8[4096]{0}', space=vmem, size = 0x1000, scoped, tag = 'input window, operand 0, single buffered']
    #allocation4 [shape = 's32[1]{0}', space=sflag, size = 0x4, scoped, tag = 'scoped memory for tpu_custom_call.1']
    #allocation5 [shape = 's32[1]{0}', space=sflag, size = 0x4, scoped, tag = 'scoped memory for tpu_custom_call.1']
    #allocation6 [shape = 'u8[65536]{0}', space=vmem, size = 0x10000, scoped, tag = 'input window, operand 1, single buffered']
    #allocation7 [shape = 's32[1]{0}', space=sflag, size = 0x4, scoped, tag = 'scoped memory for tpu_custom_call.1']
    #allocation8 [shape = 'u8[4096]{0}', space=vmem, size = 0x1000, scoped, tag = 'output window, operand 0, single buffered']
    %9 = vsyncpa [#allocation4], 0
    %10 = vsyncpa [#allocation7], 0
    %11 = vsyncpa [#allocation5], 0
    // Predicated region
    $region2: #{tpu_custom_call.1} parent=1 // pred_check
      _
    $region3: #{tpu_custom_call.1} parent=1 // pred_check_branch
      %13 = sbr.rel (0) target = $region5
    $region4: #{tpu_custom_call.1} parent=1 // pred_region
      %s15 = ssub.s32 128, 128
      %16 = vsyncadd [#allocation4], %s15
      %s18 = sshll.u32 [#allocation3], 4
      %s19 = int_to_ptr.vmem [resolvable:$true] %s18
      %21 = dma.hbm_to_vmem [thread:$0]  %s0, 128, %s19, [#allocation4]
    $region5: #{tpu_custom_call.1} parent=1 // pred_fallthru
      _
    // Predicated region
    $region6: #{tpu_custom_call.1} parent=1 // pred_check
      _
    $region7: #{tpu_custom_call.1} parent=1 // pred_check_branch
      %23 = sbr.rel (0) target = $region9
    $region8: #{tpu_custom_call.1} parent=1 // pred_region
      %s25 = ssub.s32 2048, 2048
      %26 = vsyncadd [#allocation7], %s25
      %s27 = sshll.u32 [#allocation6], 4
      %s28 = int_to_ptr.vmem [resolvable:$true] %s27
      %33 = dma.hbm_to_vmem [thread:$0]  %s1, 2048, %s28, [#allocation7], 512, 512, 32
    $region9: #{tpu_custom_call.1} parent=1 // pred_fallthru
      _
    // Predicated region
    $region10: #{tpu_custom_call.1} parent=1 // pred_check
      _
    $region11: #{tpu_custom_call.1} parent=1 // pred_check_branch
      %35 = sbr.rel (0) target = $region13
    $region12: #{tpu_custom_call.1} parent=1 // pred_region
      _
    $region13: #{tpu_custom_call.1} parent=1 // pred_fallthru
      _
    // Predicated region
    $region14: #{tpu_custom_call.1} parent=1 // pred_check
      _
    $region15: #{tpu_custom_call.1} parent=1 // pred_check_branch
      %37 = sbr.rel (0) target = $region17
    $region16: #{tpu_custom_call.1} parent=1 // pred_region
      _
    $region17: #{tpu_custom_call.1} parent=1 // pred_fallthru
      _
    // Predicated region
    $region18: #{tpu_custom_call.1} parent=1 // pred_check
      _
    $region19: #{tpu_custom_call.1} parent=1 // pred_check_branch
      %39 = sbr.rel (0) target = $region21
    $region20: #{tpu_custom_call.1} parent=1 // pred_region
      %40 = dma.done [#allocation4], 128
    $region21: #{tpu_custom_call.1} parent=1 // pred_fallthru
      _
    // Predicated region
    $region22: #{tpu_custom_call.1} parent=1 // pred_check
      _
    $region23: #{tpu_custom_call.1} parent=1 // pred_check_branch
      %42 = sbr.rel (0) target = $region25
    $region24: #{tpu_custom_call.1} parent=1 // pred_region
      %43 = dma.done [#allocation7], 2048
    $region25: #{tpu_custom_call.1} parent=1 // pred_fallthru
      _
    %p44 = scmp.eq.s32.totalorder 0, 0
    // Predicated region
    $region26: #{tpu_custom_call.1} parent=1 // pred_check
      %p45 = pneg %p44
    $region27: #{tpu_custom_call.1} parent=1 // pred_check_branch
      %47 = sbr.rel (%p45) target = $region29
    $region28: #{tpu_custom_call.1} parent=1 // pred_region
      %48 = vst [vmem:[#allocation2] sm:$0xff] 0.0
    $region29: #{tpu_custom_call.1} parent=1 // pred_fallthru
      _
    %v49 = vld [vmem:[#allocation3] sm:$0xff]
    %v50 = vld [vmem:[#allocation6] sm:$0xff]
    %v51 = vld [vmem:[#allocation6 + $0x8] sm:$0xff]
    %v52 = vld [vmem:[#allocation6 + $0x10] sm:$0xff]
    %v53 = vld [vmem:[#allocation6 + $0x18] sm:$0xff]
    %v54 = vld [vmem:[#allocation6 + $0x20] sm:$0xff]
    %v55 = vld [vmem:[#allocation6 + $0x28] sm:$0xff]
    %v56 = vld [vmem:[#allocation6 + $0x30] sm:$0xff]
    %v57 = vld [vmem:[#allocation6 + $0x38] sm:$0xff]
    %v58 = vld [vmem:[#allocation6 + $0x40] sm:$0xff]
    %v59 = vld [vmem:[#allocation6 + $0x48] sm:$0xff]
    %v60 = vld [vmem:[#allocation6 + $0x50] sm:$0xff]
    %v61 = vld [vmem:[#allocation6 + $0x58] sm:$0xff]
    %v62 = vld [vmem:[#allocation6 + $0x60] sm:$0xff]
    %v63 = vld [vmem:[#allocation6 + $0x68] sm:$0xff]
    %v64 = vld [vmem:[#allocation6 + $0x70] sm:$0xff]
    %v65 = vld [vmem:[#allocation6 + $0x78] sm:$0xff]
    %vm66 = vcmask 261120
    %v68 = vsel %vm66, %v49, 0
    %70 = vmatprep.subr.mxu0 %v51
    %71 = vmatpush1.msra.mxu0 %v50
    %72 = vmatprep.subr.mxu0 %v55
    %73 = vmatpush1.msra.mxu0 %v54
    %74 = vmatprep.subr.mxu0 %v59
    %75 = vmatpush1.msra.mxu0 %v58
    %76 = vmatprep.subr.mxu0 %v63
    %77 = vmatpush1.msra.mxu0 %v62
    %78 = vmatprep.subr.mxu0 0.0
    %79 = vmatpush1.msra.mxu0 0.0
    %80 = vmatprep.subr.mxu0 0.0
    %81 = vmatpush1.msra.mxu0 0.0
    %82 = vmatprep.subr.mxu0 0.0
    %83 = vmatpush1.msra.mxu0 0.0
    %84 = vmatprep.subr.mxu0 0.0
    %85 = vmatpush1.msra.mxu0 0.0
    %86 = vmatprep.subr.mxu0 0.0
    %87 = vmatpush1.msra.mxu0 0.0
    %88 = vmatprep.subr.mxu0 0.0
    %89 = vmatpush1.msra.mxu0 0.0
    %90 = vmatprep.subr.mxu0 0.0
    %91 = vmatpush1.msra.mxu0 0.0
    %92 = vmatprep.subr.mxu0 0.0
    %93 = vmatpush1.msra.mxu0 0.0
    %94 = vmatprep.subr.mxu0 0.0
    %95 = vmatpush1.msra.mxu0 0.0
    %96 = vmatprep.subr.mxu0 0.0
    %97 = vmatpush1.msra.mxu0 0.0
    %98 = vmatprep.subr.mxu0 0.0
    %99 = vmatpush1.msra.mxu0 0.0
    %100 = vmatprep.subr.mxu0 0.0
    %101 = vmatpush1.msra.mxu0 0.0
    %102 = vmatprep.subr.mxu0 0.0
    %103 = vmatpush1.msra.mxu0 0.0
    %104 = vmatprep.subr.mxu0 0.0
    %105 = vmatpush1.msra.mxu0 0.0
    %106 = vmatprep.subr.mxu0 0.0
    %107 = vmatpush1.msra.mxu0 0.0
    %108 = vmatprep.subr.mxu0 0.0
    %109 = vmatpush1.msra.mxu0 0.0
    %110 = vmatprep.subr.mxu0 0.0
    %111 = vmatpush1.msra.mxu0 0.0
    %112 = vmatprep.subr.mxu0 0.0
    %113 = vmatpush1.msra.mxu0 0.0
    %114 = vmatprep.subr.mxu0 0.0
    %115 = vmatpush1.msra.mxu0 0.0
    %116 = vmatprep.subr.mxu0 0.0
    %117 = vmatpush1.msra.mxu0 0.0
    %118 = vmatprep.subr.mxu0 0.0
    %119 = vmatpush1.msra.mxu0 0.0
    %120 = vmatprep.subr.mxu0 0.0
    %121 = vmatpush1.msra.mxu0 0.0
    %122 = vmatprep.subr.mxu0 0.0
    %123 = vmatpush1.msra.mxu0 0.0
    %124 = vmatprep.subr.mxu0 0.0
    %125 = vmatpush1.msra.mxu0 0.0
    %126 = vmatprep.subr.mxu0 0.0
    %127 = vmatpush1.msra.mxu0 0.0
    %128 = vmatprep.subr.mxu0 0.0
    %129 = vmatpush1.msra.mxu0 0.0
    %130 = vmatprep.subr.mxu0 0.0
    %131 = vmatpush1.msra.mxu0 0.0
    %132 = vmatprep.subr.mxu0 0.0
    %133 = vmatpush1.msra.mxu0 0.0
    %134 = vmatprep.mubr.f32.mxu0 0.0
    %135 = vmatmul.mubr.f32.gmra.mrb[0].mxu0 %v68
    %v136 = vpop.f32.mrb[0].mxu0
    %v137 = vadd.f32 0.0, %v136
    %v138 = vpop.f32.mrb[0].mxu0
    %v139 = vadd.f32 0.0, %v138
    %140 = vdwg.mxu0
    %141 = vmatprep.subr.mxu0 %v53
    %142 = vmatpush1.msra.mxu0 %v52
    %143 = vmatprep.subr.mxu0 %v57
    %144 = vmatpush1.msra.mxu0 %v56
    %145 = vmatprep.subr.mxu0 %v61
    %146 = vmatpush1.msra.mxu0 %v60
    %147 = vmatprep.subr.mxu0 %v65
    %148 = vmatpush1.msra.mxu0 %v64
    %149 = vmatprep.subr.mxu0 0.0
    %150 = vmatpush1.msra.mxu0 0.0
    %151 = vmatprep.subr.mxu0 0.0
    %152 = vmatpush1.msra.mxu0 0.0
    %153 = vmatprep.subr.mxu0 0.0
    %154 = vmatpush1.msra.mxu0 0.0
    %155 = vmatprep.subr.mxu0 0.0
    %156 = vmatpush1.msra.mxu0 0.0
    %157 = vmatprep.subr.mxu0 0.0
    %158 = vmatpush1.msra.mxu0 0.0
    %159 = vmatprep.subr.mxu0 0.0
    %160 = vmatpush1.msra.mxu0 0.0
    %161 = vmatprep.subr.mxu0 0.0
    %162 = vmatpush1.msra.mxu0 0.0
    %163 = vmatprep.subr.mxu0 0.0
    %164 = vmatpush1.msra.mxu0 0.0
    %165 = vmatprep.subr.mxu0 0.0
    %166 = vmatpush1.msra.mxu0 0.0
    %167 = vmatprep.subr.mxu0 0.0
    %168 = vmatpush1.msra.mxu0 0.0
    %169 = vmatprep.subr.mxu0 0.0
    %170 = vmatpush1.msra.mxu0 0.0
    %171 = vmatprep.subr.mxu0 0.0
    %172 = vmatpush1.msra.mxu0 0.0
    %173 = vmatprep.subr.mxu0 0.0
    %174 = vmatpush1.msra.mxu0 0.0
    %175 = vmatprep.subr.mxu0 0.0
    %176 = vmatpush1.msra.mxu0 0.0
    %177 = vmatprep.subr.mxu0 0.0
    %178 = vmatpush1.msra.mxu0 0.0
    %179 = vmatprep.subr.mxu0 0.0
    %180 = vmatpush1.msra.mxu0 0.0
    %181 = vmatprep.subr.mxu0 0.0
    %182 = vmatpush1.msra.mxu0 0.0
    %183 = vmatprep.subr.mxu0 0.0
    %184 = vmatpush1.msra.mxu0 0.0
    %185 = vmatprep.subr.mxu0 0.0
    %186 = vmatpush1.msra.mxu0 0.0
    %187 = vmatprep.subr.mxu0 0.0
    %188 = vmatpush1.msra.mxu0 0.0
    %189 = vmatprep.subr.mxu0 0.0
    %190 = vmatpush1.msra.mxu0 0.0
    %191 = vmatprep.subr.mxu0 0.0
    %192 = vmatpush1.msra.mxu0 0.0
    %193 = vmatprep.subr.mxu0 0.0
    %194 = vmatpush1.msra.mxu0 0.0
    %195 = vmatprep.subr.mxu0 0.0
    %196 = vmatpush1.msra.mxu0 0.0
    %197 = vmatprep.subr.mxu0 0.0
    %198 = vmatpush1.msra.mxu0 0.0
    %199 = vmatprep.subr.mxu0 0.0
    %200 = vmatpush1.msra.mxu0 0.0
    %201 = vmatprep.subr.mxu0 0.0
    %202 = vmatpush1.msra.mxu0 0.0
    %203 = vmatprep.subr.mxu0 0.0
    %204 = vmatpush1.msra.mxu0 0.0
    %205 = vmatprep.mubr.f32.mxu0 0.0
    %206 = vmatmul.mubr.f32.gmra.mrb[0].mxu0 %v68
    %v207 = vpop.f32.mrb[0].mxu0
    %v208 = vadd.f32 0.0, %v207
    %v209 = vpop.f32.mrb[0].mxu0
    %v210 = vadd.f32 0.0, %v209
    %211 = vdwg.mxu0
    %v212 = vld [vmem:[#allocation2] ss:$2 sm:$0xf]
    %v213 = vrot.slane %v137, 4
    %v214 = vadd.f32 %v137, %v213
    %v215 = vrot.slane %v214, 2
    %v216 = vadd.f32 %v214, %v215
    %v217 = vrot.slane %v216, 1
    %v218 = vadd.f32 %v216, %v217
    %v219 = vrot.slane %v139, 4
    %v220 = vadd.f32 %v139, %v219
    %v221 = vrot.slane %v220, 2
    %v222 = vadd.f32 %v220, %v221
    %v223 = vrot.slane %v222, 1
    %v224 = vadd.f32 %v222, %v223
    %v225 = vrot.slane %v208, 4
    %v226 = vadd.f32 %v208, %v225
    %v227 = vrot.slane %v226, 2
    %v228 = vadd.f32 %v226, %v227
    %v229 = vrot.slane %v228, 1
    %v230 = vadd.f32 %v228, %v229
    %v231 = vrot.slane %v210, 4
    %v232 = vadd.f32 %v210, %v231
    %v233 = vrot.slane %v232, 2
    %v234 = vadd.f32 %v232, %v233
    %v235 = vrot.slane %v234, 1
    %v236 = vadd.f32 %v234, %v235
    %v241 = vcombine.low %v218, %v224
    %v242 = vcombine.low %v230, %v236
    %v244 = vunpack.c.l.s4 1966171168
    %v245 = vunpack.c.0.s8 %v244
    %v246 = vlaneseq
    %v247 = vshrl.u32 %v246, 7
    %v248 = vsub.s32 %v245, %v247
    %v249 = vrot.slane %v241, %v248
    %v251 = vunpack.c.l.s4 1966171168
    %v252 = vunpack.c.0.s8 %v251
    %v253 = vlaneseq
    %v254 = vshrl.u32 %v253, 7
    %v255 = vsub.s32 %v252, %v254
    %v256 = vrot.slane %v242, %v255
    %v257 = vcombine.low %v249, %v256
    %v259 = vunpack.c.l.s4 1966171168
    %v260 = vunpack.c.0.s8 %v259
    %v261 = vlaneseq
    %v262 = vshrl.u32 %v261, 7
    %v263 = vsub.s32 %v260, %v262
    %v264 = vrot.slane %v257, %v263
    %v266 = vadd.f32 %v212, %v264
    %v267 = vlaneseq
    %vm268 = vcmp.ge.s32.totalorder %v267, 0
    %vm269 = vcmp.lt.s32.totalorder %v267, 512
    %vm270 = vmand %vm268, %vm269
    %271 = vst.msk [vmem:[#allocation2] ss:$2 sm:$0xf] %vm270, %v266
    %s272 = scalar_lea.vmem [#allocation2], 1
    %v273 = vld [vmem:[%s272] ss:$2 sm:$0xf]
    %v274 = vmul.f32 %v137, %v137
    %v275 = vmul.f32 %v139, %v139
    %v276 = vmul.f32 %v208, %v208
    %v277 = vmul.f32 %v210, %v210
    %v278 = vrot.slane %v274, 4
    %v279 = vadd.f32 %v274, %v278
    %v280 = vrot.slane %v279, 2
    %v281 = vadd.f32 %v279, %v280
    %v282 = vrot.slane %v281, 1
    %v283 = vadd.f32 %v281, %v282
    %v284 = vrot.slane %v275, 4
    %v285 = vadd.f32 %v275, %v284
    %v286 = vrot.slane %v285, 2
    %v287 = vadd.f32 %v285, %v286
    %v288 = vrot.slane %v287, 1
    %v289 = vadd.f32 %v287, %v288
    %v290 = vrot.slane %v276, 4
    %v291 = vadd.f32 %v276, %v290
    %v292 = vrot.slane %v291, 2
    %v293 = vadd.f32 %v291, %v292
    %v294 = vrot.slane %v293, 1
    %v295 = vadd.f32 %v293, %v294
    %v296 = vrot.slane %v277, 4
    %v297 = vadd.f32 %v277, %v296
    %v298 = vrot.slane %v297, 2
    %v299 = vadd.f32 %v297, %v298
    %v300 = vrot.slane %v299, 1
    %v301 = vadd.f32 %v299, %v300
    %v306 = vcombine.low %v283, %v289
    %v307 = vcombine.low %v295, %v301
    %v309 = vunpack.c.l.s4 1966171168
    %v310 = vunpack.c.0.s8 %v309
    %v311 = vlaneseq
    %v312 = vshrl.u32 %v311, 7
    %v313 = vsub.s32 %v310, %v312
    %v314 = vrot.slane %v306, %v313
    %v316 = vunpack.c.l.s4 1966171168
    %v317 = vunpack.c.0.s8 %v316
    %v318 = vlaneseq
    %v319 = vshrl.u32 %v318, 7
    %v320 = vsub.s32 %v317, %v319
    %v321 = vrot.slane %v307, %v320
    %v322 = vcombine.low %v314, %v321
    %v324 = vunpack.c.l.s4 1966171168
    %v325 = vunpack.c.0.s8 %v324
    %v326 = vlaneseq
    %v327 = vshrl.u32 %v326, 7
    %v328 = vsub.s32 %v325, %v327
    %v329 = vrot.slane %v322, %v328
    %v331 = vadd.f32 %v273, %v329
    %332 = vst.msk [vmem:[%s272] ss:$2 sm:$0xf] %vm270, %v331
    // Predicated region
    $region30: #{tpu_custom_call.1} parent=1 // pred_check
      %p333 = pneg %p44
    $region31: #{tpu_custom_call.1} parent=1 // pred_check_branch
      %335 = sbr.rel (%p333) target = $region33
    $region32: #{tpu_custom_call.1} parent=1 // pred_region
      %v336 = vld [vmem:[#allocation2] ss:$2 sm:$0xf]
      %v337 = vmul.f32 %v336, 0.125
      %v338 = vld [vmem:[%s272] ss:$2 sm:$0xf]
      %v339 = vmul.f32 %v338, 0.125
      %v340 = vmul.f32 %v337, %v337
      %v341 = vsub.f32 %v339, %v340
      %v342 = vld [vmem:[%s2] sm:$0xf]
      %v343 = vadd.f32 %v341, 1e-05
      %v344 = vrsqrt.pop %v343
      %v345 = vmul.f32 %v342, %v344
      %346 = vst.msk [vmem:[#allocation8] ss:$2 sm:$0xf] %vm270, %v345
      %v347 = vld [vmem:[%s3] sm:$0xf]
      %v348 = vmul.f32 %v337, %v345
      %v349 = vsub.f32 %v347, %v348
      %s350 = scalar_lea.vmem [#allocation8], 1
      %351 = vst.msk [vmem:[%s350] ss:$2 sm:$0xf] %vm270, %v349
    $region33: #{tpu_custom_call.1} parent=1 // pred_fallthru
      _
    // Predicated region
    $region34: #{tpu_custom_call.1} parent=1 // pred_check
      _
    $region35: #{tpu_custom_call.1} parent=1 // pred_check_branch
      %353 = sbr.rel (0) target = $region37
    $region36: #{tpu_custom_call.1} parent=1 // pred_region
      %s355 = ssub.s32 128, 128
      %356 = vsyncadd [#allocation5], %s355
      %s358 = sshll.u32 [#allocation8], 4
      %s359 = int_to_ptr.vmem [resolvable:$true] %s358
      %361 = dma.vmem_to_hbm [thread:$0]  %s359, 128, %s4, [#allocation5]
    $region37: #{tpu_custom_call.1} parent=1 // pred_fallthru
      _
    // Predicated region
    $region38: #{tpu_custom_call.1} parent=1 // pred_check
      _
    $region39: #{tpu_custom_call.1} parent=1 // pred_check_branch
      %363 = sbr.rel (0) target = $region41
    $region40: #{tpu_custom_call.1} parent=1 // pred_region
      %364 = dma.done [#allocation5], 128
    $region41: #{tpu_custom_call.1} parent=1 // pred_fallthru
      _
    %365 = vsyncpa [#allocation4], 1
    %366 = vsyncpa [#allocation7], 1
    %367 = vsyncpa [#allocation5], 1

</llo_original>
